<compile_context>
chip_gen: v7x
topology: tpu7x:2x2x1
jax: 0.10.0
libtpu: 0.0.40
codegen_flags: <defaults>
</compile_context>

<pallas_src>
import functools

import jax
import jax.numpy as jnp
from jax.experimental import pallas as pl
from jax.experimental.pallas import tpu as pltpu


def _cdiv(a, b):
    return (a + b - 1) // b


def _round_up(x, m):
    return ((x + m - 1) // m) * m


def _pick_row_tile(n, target=1024, min_steps=4):
    """Row tile: <= target, a multiple of 8 (or == n when n < 8), and small
    enough that the grid has >= min_steps steps when n allows it (v7x 2-TC)."""
    if n <= 8:
        return n
    cap = _round_up(_cdiv(n, min_steps), 8)
    return max(8, min(target, cap, _round_up(n, 8)))


# ----------------------------------------------------------------------------
# Pallas kernel: fused Score module (both heads, all grams) for a row tile.
# ----------------------------------------------------------------------------
def _score_kernel(ctx_ref, mids_ref, w1c_ref, w1m_ref, b1_ref, w2_ref, b2_ref,
                  synt_ref, sent_ref, *, num_grams):
    # Shared 4-word context: one MXU pass per batch row (f32 accumulation).
    base = jnp.dot(ctx_ref[...], w1c_ref[...],
                   preferred_element_type=jnp.float32) + b1_ref[...]
    w1m = w1m_ref[...]
    w2 = w2_ref[...]
    b2 = b2_ref[...]
    for g in range(num_grams):                       # static unroll, G is small
        # Per-gram middle-word contribution to the fused layer-1 of both heads.
        h = base + jnp.dot(mids_ref[g], w1m, preferred_element_type=jnp.float32)
        h = jnp.clip(h, -1.0, 1.0)                   # Hardtanh (both heads), VPU
        # Block-diagonal second layer, kept 128-lane wide for the MXU:
        #   lane 0 = synt score, lane 1 = l0-l1, lane 2 = l1-l0, lanes 3.. = 0.
        o = jnp.dot(h.astype(jnp.bfloat16), w2,
                    preferred_element_type=jnp.float32) + b2
        synt_ref[g] = o[:, 0:1]
        # 2-class softmax == sigmoid(logit diff); tanh form runs on the EUP.
        sent_ref[g] = 0.5 * (1.0 + jnp.tanh(0.5 * o[:, 1:3]))


def score_pallas(ctx, mids, params, *, row_tile=1024):
    """ctx: (B, 4E) bf16 shared-context features; mids: (G, B, E) bf16 middle
    words.  Returns (synt (G,B,1) f32, sent (G,B,2) f32)."""
    b, d_ctx = ctx.shape
    g, _, e = mids.shape
    w1c, w1m, b1, w2, b2 = (params["w1c"], params["w1m"], params["b1"],
                            params["w2"], params["b2"])

    tb = _pick_row_tile(b, row_tile)
    grid = (_cdiv(b, tb),)                 # edge block masked by Pallas (no pad)

    # Double-buffered tiles + resident weights; raise the scoped-VMEM limit only
    # when the tile actually needs it (keeps v7x's smaller VMEM happy).
    # (For very large 5E, marking the constant-index weight specs
    #  pipeline_mode=pl.Buffered(1) would also halve their VMEM footprint.)
    vmem_est = (2 * tb * (d_ctx + g * e) * 2            # ctx + mids tiles (bf16)
                + 2 * g * tb * (1 + 2) * 4              # synt + sent tiles (f32)
                + 2 * (w1c.size + w1m.size + w2.size) * 2
                + 2 * (b1.size + b2.size) * 4)
    ckw = dict(dimension_semantics=("parallel",))
    if vmem_est > 14 * 1024 * 1024:
        ckw["vmem_limit_bytes"] = min(int(vmem_est * 3 // 2) + (4 << 20), 100 << 20)

    return pl.pallas_call(
        functools.partial(_score_kernel, num_grams=g),
        out_shape=(jax.ShapeDtypeStruct((g, b, 1), jnp.float32),
                   jax.ShapeDtypeStruct((g, b, 2), jnp.float32)),
        grid=grid,
        in_specs=[
            pl.BlockSpec((tb, d_ctx), lambda i: (i, 0)),      # row-tiled context
            pl.BlockSpec((g, tb, e), lambda i: (0, i, 0)),    # row-tiled middles
            pl.BlockSpec(w1c.shape, lambda i: (0, 0)),        # resident weights
            pl.BlockSpec(w1m.shape, lambda i: (0, 0)),
            pl.BlockSpec(b1.shape, lambda i: (0, 0)),
            pl.BlockSpec(w2.shape, lambda i: (0, 0)),
            pl.BlockSpec(b2.shape, lambda i: (0, 0)),
        ],
        out_specs=(pl.BlockSpec((g, tb, 1), lambda i: (0, i, 0)),
                   pl.BlockSpec((g, tb, 2), lambda i: (0, i, 0))),
        compiler_params=pltpu.CompilerParams(**ckw),
    )(ctx, mids, w1c, w1m, b1, w2, b2)


# ----------------------------------------------------------------------------
# SSWE forward: minimal embedding gather + fused Score kernel.
# ----------------------------------------------------------------------------
@jax.jit
def sswe_forward(x_idx, params):
    """x_idx: (B, L) int32, L >= 5.  Columns [0:5] form the true 5-gram; columns
    [5:] are corrupt middle words.  Returns a list of (synt (B,1), sent (B,2))
    tuples: true gram first, then one per corrupt middle word."""
    b, l = x_idx.shape
    embed = params["embed"]                     # bf16, pre-cast once at init
    e = embed.shape[1]
    num_grams = 1 + (l - 5)

    # Gather exactly the embedding rows used (no (G*B, 5E) gram intermediate):
    # shared context words 0,1,3,4 plus the per-gram middle words [2,5,..,L-1].
    ctx_tok = x_idx[:, jnp.array([0, 1, 3, 4], jnp.int32)]              # (B, 4)
    mid_tok = x_idx[:, jnp.array([2] + list(range(5, l)), jnp.int32)]   # (B, G)
    ctx = jnp.take(embed, ctx_tok.reshape(-1), axis=0).reshape(b, 4 * e)
    mids = jnp.take(embed, mid_tok.T.reshape(-1), axis=0).reshape(num_grams, b, e)

    synt, sent = score_pallas(ctx, mids, params)
    return [(synt[g], sent[g]) for g in range(num_grams)]


# ----------------------------------------------------------------------------
# Pure-JAX f32 reference mirroring the PyTorch module (for correctness check).
# ----------------------------------------------------------------------------
def sswe_reference(x_idx, raw):
    emb = raw["embed"][x_idx]                                    # (B, L, E) f32
    b, l, _ = emb.shape

    def score(gram):
        hs = jnp.clip(gram @ raw["w1s"] + raw["b1s"], -1.0, 1.0)
        synt = hs @ raw["w2s"] + raw["b2s"]
        he = jnp.clip(gram @ raw["w1e"] + raw["b1e"], -1.0, 1.0)
        sent = jax.nn.softmax(he @ raw["w2e"] + raw["b2e"], axis=-1)
        return synt, sent

    outs = [score(emb[:, :5].reshape(b, -1))]
    for step in range(5, l):
        gram = jnp.concatenate(
            [emb[:, 0], emb[:, 1], emb[:, step], emb[:, 3], emb[:, 4]], axis=1)
        outs.append(score(gram))
    return outs


# ----------------------------------------------------------------------------
# Deterministic parameter init, fused/split for the kernel layout.
# ----------------------------------------------------------------------------
def init_params(key, voc_size, embed_dim):
    d = 5 * embed_dim
    ks = jax.random.split(key, 9)

    def lin(k, fan_in, shape):
        bound = 1.0 / (fan_in ** 0.5)
        return jax.random.uniform(k, shape, jnp.float32, -bound, bound)

    # nn.Embedding default init ~ N(0, 1).
    # TODO(synk): the optional Word2Vec-file init ('w2v' in init_sswe_embed)
    # needs on-disk data and is not reproduced here.
    embed = jax.random.normal(ks[0], (voc_size, embed_dim), jnp.float32)

    # Raw per-head params (PyTorch (out,in) transposed to (in,out)).
    w1s = lin(ks[1], d, (d, 128));   b1s = lin(ks[2], d, (128,))
    w2s = lin(ks[3], 128, (128, 1)); b2s = lin(ks[4], 128, (1,))
    w1e = lin(ks[5], d, (d, 128));   b1e = lin(ks[6], d, (128,))
    w2e = lin(ks[7], 128, (128, 2)); b2e = lin(ks[8], 128, (2,))

    # ---- fuse both heads & split layer-1 into shared-context / middle-word ----
    # layer-1 (5E, 256): cols 0:128 = synt hidden, cols 128:256 = sent hidden.
    w1 = jnp.concatenate([w1s, w1e], axis=1)                          # (5E, 256)
    w1c = jnp.concatenate([w1[:2 * embed_dim], w1[3 * embed_dim:]], axis=0)
    w1m = w1[2 * embed_dim:3 * embed_dim]                             # (E, 256)
    b1 = jnp.concatenate([b1s, b1e]).reshape(1, 256)

    # layer-2: block-diagonal, padded to 128 lane-dense MXU output columns.
    #   col 0 = synt score, col 1 = sent l0-l1, col 2 = sent l1-l0
    # (2-class softmax == sigmoid of the logit difference, applied in-kernel).
    w2 = jnp.zeros((256, 128), jnp.float32)
    w2 = w2.at[:128, 0].set(w2s[:, 0])
    w2 = w2.at[128:, 1].set(w2e[:, 0] - w2e[:, 1])
    w2 = w2.at[128:, 2].set(w2e[:, 1] - w2e[:, 0])
    b2 = jnp.zeros((1, 128), jnp.float32)
    b2 = b2.at[0, 0].set(b2s[0])
    b2 = b2.at[0, 1].set(b2e[0] - b2e[1])
    b2 = b2.at[0, 2].set(b2e[1] - b2e[0])

    params = dict(
        embed=embed.astype(jnp.bfloat16),        # cast ONCE, reused every call
        w1c=w1c.astype(jnp.bfloat16),            # MXU operands in bf16
        w1m=w1m.astype(jnp.bfloat16),
        w2=w2.astype(jnp.bfloat16),
        b1=b1, b2=b2,                            # biases stay f32
    )
    raw = dict(embed=embed, w1s=w1s, b1s=b1s, w2s=w2s, b2s=b2s,
               w1e=w1e, b1e=b1e, w2e=w2e, b2e=b2e)
    return params, raw


if __name__ == "__main__":
    key = jax.random.PRNGKey(0)
    k_param, k_idx = jax.random.split(key)

    voc_size = 100
    embed_dim = 32
    batch = 2
    seq_len = 8  # 5 true-gram positions + 3 corrupt middle-word candidates

    params, raw = init_params(k_param, voc_size, embed_dim)
    x = jax.random.randint(k_idx, (batch, seq_len), 0, voc_size, dtype=jnp.int32)

    scores = sswe_forward(x, params)
    scores = jax.block_until_ready(scores)

    # Sanity: one (synt, sent) pair per (true + corrupt) gram; softmax rows sum
    # to 1; bf16 kernel matches the f32 reference to a loose tolerance.
    refs = sswe_reference(x, raw)
    assert len(scores) == 1 + (seq_len - 5)
    for (synt_s, sent_s), (synt_r, sent_r) in zip(scores, refs):
        assert synt_s.shape == (batch, 1) and sent_s.shape == (batch, 2)
        assert bool(jnp.all(jnp.isfinite(synt_s)) and jnp.all(jnp.isfinite(sent_s)))
        assert bool(jnp.allclose(jnp.sum(sent_s, axis=-1), 1.0, atol=1e-3))
        assert bool(jnp.max(jnp.abs(synt_s - synt_r)) < 1e-1)
        assert bool(jnp.max(jnp.abs(sent_s - sent_r)) < 1e-1)

    print("KERNEL_OK")
</pallas_src>

<mosaic_0001>
module attributes {stable_mosaic.version = 11 : i64} {
  func.func @_score_kernel(%arg0: i32, %arg1: memref<2x128xbf16, #tpu.memory_space<vmem>>, %arg2: memref<4x2x32xbf16, #tpu.memory_space<vmem>>, %arg3: memref<128x256xbf16, #tpu.memory_space<vmem>>, %arg4: memref<32x256xbf16, #tpu.memory_space<vmem>>, %arg5: memref<1x256xf32, #tpu.memory_space<vmem>>, %arg6: memref<256x128xbf16, #tpu.memory_space<vmem>>, %arg7: memref<1x128xf32, #tpu.memory_space<vmem>>, %arg8: memref<4x2x1xf32, #tpu.memory_space<vmem>>, %arg9: memref<4x2x2xf32, #tpu.memory_space<vmem>>) attributes {dimension_semantics = [#tpu.dimension_semantics<parallel>], iteration_bounds = array<i64: 1>, scalar_prefetch = 0 : i64, scratch_operands = 0 : i64, tpu.core_type = #tpu.core_type<tc>, window_params = [{transform_indices = @transform_0, window_bounds = array<i64: 2, 128>}, {transform_indices = @transform_1, window_bounds = array<i64: 4, 2, 32>}, {pipeline_mode = #tpu.pipeline_mode<synchronous>, transform_indices = @transform_2, window_bounds = array<i64: 128, 256>}, {pipeline_mode = #tpu.pipeline_mode<synchronous>, transform_indices = @transform_3, window_bounds = array<i64: 32, 256>}, {pipeline_mode = #tpu.pipeline_mode<synchronous>, transform_indices = @transform_4, window_bounds = array<i64: 1, 256>}, {pipeline_mode = #tpu.pipeline_mode<synchronous>, transform_indices = @transform_5, window_bounds = array<i64: 256, 128>}, {pipeline_mode = #tpu.pipeline_mode<synchronous>, transform_indices = @transform_6, window_bounds = array<i64: 1, 128>}, {transform_indices = @transform_7, window_bounds = array<i64: 4, 2, 1>}, {transform_indices = @transform_8, window_bounds = array<i64: 4, 2, 2>}]} {
    %c0 = arith.constant 0 : index
    %c0_0 = arith.constant 0 : index
    %0 = vector.load %arg1[%c0, %c0_0] : memref<2x128xbf16, #tpu.memory_space<vmem>>, vector<2x128xbf16>
    %c0_1 = arith.constant 0 : index
    %c0_2 = arith.constant 0 : index
    %1 = vector.load %arg3[%c0_1, %c0_2] : memref<128x256xbf16, #tpu.memory_space<vmem>>, vector<128x256xbf16>
    %cst = arith.constant dense<0.000000e+00> : vector<2x256xf32>
    %2 = tpu.matmul %0, %1, %cst {dimension_numbers = #tpu.dot_dimension_numbers<[1], [0], [0], [1], [0, 0, 1, 1], [], []>} : vector<2x128xbf16>, vector<128x256xbf16>, vector<2x256xf32> -> vector<2x256xf32>
    %c0_3 = arith.constant 0 : index
    %c0_4 = arith.constant 0 : index
    %3 = vector.load %arg5[%c0_3, %c0_4] : memref<1x256xf32, #tpu.memory_space<vmem>>, vector<1x256xf32>
    %4 = vector.broadcast %3 : vector<1x256xf32> to vector<2x256xf32>
    %5 = arith.addf %2, %4 : vector<2x256xf32>
    %c0_5 = arith.constant 0 : index
    %c0_6 = arith.constant 0 : index
    %6 = vector.load %arg4[%c0_5, %c0_6] : memref<32x256xbf16, #tpu.memory_space<vmem>>, vector<32x256xbf16>
    %c0_7 = arith.constant 0 : index
    %c0_8 = arith.constant 0 : index
    %7 = vector.load %arg6[%c0_7, %c0_8] : memref<256x128xbf16, #tpu.memory_space<vmem>>, vector<256x128xbf16>
    %c0_9 = arith.constant 0 : index
    %c0_10 = arith.constant 0 : index
    %8 = vector.load %arg7[%c0_9, %c0_10] : memref<1x128xf32, #tpu.memory_space<vmem>>, vector<1x128xf32>
    %c0_11 = arith.constant 0 : index
    %c0_12 = arith.constant 0 : index
    %c0_13 = arith.constant 0 : index
    %9 = vector.load %arg2[%c0_11, %c0_12, %c0_13] : memref<4x2x32xbf16, #tpu.memory_space<vmem>>, vector<1x2x32xbf16>
    %10 = vector.shape_cast %9 : vector<1x2x32xbf16> to vector<2x32xbf16>
    %cst_14 = arith.constant dense<0.000000e+00> : vector<2x256xf32>
    %11 = tpu.matmul %10, %6, %cst_14 {dimension_numbers = #tpu.dot_dimension_numbers<[1], [0], [0], [1], [0, 0, 1, 1], [], []>} : vector<2x32xbf16>, vector<32x256xbf16>, vector<2x256xf32> -> vector<2x256xf32>
    %12 = arith.addf %5, %11 : vector<2x256xf32>
    %cst_15 = arith.constant -1.000000e+00 : f32
    %cst_16 = arith.constant 1.000000e+00 : f32
    %13 = vector.broadcast %cst_15 : f32 to vector<2x256xf32>
    %14 = arith.maximumf %13, %12 : vector<2x256xf32>
    %15 = vector.broadcast %cst_16 : f32 to vector<2x256xf32>
    %16 = arith.minimumf %15, %14 : vector<2x256xf32>
    %17 = arith.truncf %16 : vector<2x256xf32> to vector<2x256xbf16>
    %cst_17 = arith.constant dense<0.000000e+00> : vector<2x128xf32>
    %18 = tpu.matmul %17, %7, %cst_17 {dimension_numbers = #tpu.dot_dimension_numbers<[1], [0], [0], [1], [0, 0, 1, 1], [], []>} : vector<2x256xbf16>, vector<256x128xbf16>, vector<2x128xf32> -> vector<2x128xf32>
    %19 = vector.broadcast %8 : vector<1x128xf32> to vector<2x128xf32>
    %20 = arith.addf %18, %19 : vector<2x128xf32>
    %21 = vector.extract_strided_slice %20 {offsets = [0, 0], sizes = [2, 1], strides = [1, 1]} : vector<2x128xf32> to vector<2x1xf32>
    %c0_18 = arith.constant 0 : index
    %c0_19 = arith.constant 0 : index
    %c0_20 = arith.constant 0 : index
    %22 = vector.load %arg8[%c0_18, %c0_19, %c0_20] : memref<4x2x1xf32, #tpu.memory_space<vmem>>, vector<1x2x1xf32>
    %23 = vector.shape_cast %22 : vector<1x2x1xf32> to vector<2x1xf32>
    %24 = vector.shape_cast %21 : vector<2x1xf32> to vector<1x2x1xf32>
    tpu.vector_store %arg8[%c0_18, %c0_19, %c0_20], %24 {strides = array<i32>} : memref<4x2x1xf32, #tpu.memory_space<vmem>>, vector<1x2x1xf32>,
    %25 = vector.extract_strided_slice %20 {offsets = [0, 1], sizes = [2, 2], strides = [1, 1]} : vector<2x128xf32> to vector<2x2xf32>
    %cst_21 = arith.constant 5.000000e-01 : f32
    %26 = vector.broadcast %cst_21 : f32 to vector<2x2xf32>
    %27 = arith.mulf %26, %25 : vector<2x2xf32>
    %28 = math.tanh %27 : vector<2x2xf32>
    %cst_22 = arith.constant 1.000000e+00 : f32
    %29 = vector.broadcast %cst_22 : f32 to vector<2x2xf32>
    %30 = arith.addf %29, %28 : vector<2x2xf32>
    %cst_23 = arith.constant 5.000000e-01 : f32
    %31 = vector.broadcast %cst_23 : f32 to vector<2x2xf32>
    %32 = arith.mulf %31, %30 : vector<2x2xf32>
    %c0_24 = arith.constant 0 : index
    %c0_25 = arith.constant 0 : index
    %c0_26 = arith.constant 0 : index
    %33 = vector.load %arg9[%c0_24, %c0_25, %c0_26] : memref<4x2x2xf32, #tpu.memory_space<vmem>>, vector<1x2x2xf32>
    %34 = vector.shape_cast %33 : vector<1x2x2xf32> to vector<2x2xf32>
    %35 = vector.shape_cast %32 : vector<2x2xf32> to vector<1x2x2xf32>
    tpu.vector_store %arg9[%c0_24, %c0_25, %c0_26], %35 {strides = array<i32>} : memref<4x2x2xf32, #tpu.memory_space<vmem>>, vector<1x2x2xf32>,
    %c1 = arith.constant 1 : index
    %c0_27 = arith.constant 0 : index
    %c0_28 = arith.constant 0 : index
    %36 = vector.load %arg2[%c1, %c0_27, %c0_28] : memref<4x2x32xbf16, #tpu.memory_space<vmem>>, vector<1x2x32xbf16>
    %37 = vector.shape_cast %36 : vector<1x2x32xbf16> to vector<2x32xbf16>
    %cst_29 = arith.constant dense<0.000000e+00> : vector<2x256xf32>
    %38 = tpu.matmul %37, %6, %cst_29 {dimension_numbers = #tpu.dot_dimension_numbers<[1], [0], [0], [1], [0, 0, 1, 1], [], []>} : vector<2x32xbf16>, vector<32x256xbf16>, vector<2x256xf32> -> vector<2x256xf32>
    %39 = arith.addf %5, %38 : vector<2x256xf32>
    %cst_30 = arith.constant -1.000000e+00 : f32
    %cst_31 = arith.constant 1.000000e+00 : f32
    %40 = vector.broadcast %cst_30 : f32 to vector<2x256xf32>
    %41 = arith.maximumf %40, %39 : vector<2x256xf32>
    %42 = vector.broadcast %cst_31 : f32 to vector<2x256xf32>
    %43 = arith.minimumf %42, %41 : vector<2x256xf32>
    %44 = arith.truncf %43 : vector<2x256xf32> to vector<2x256xbf16>
    %cst_32 = arith.constant dense<0.000000e+00> : vector<2x128xf32>
    %45 = tpu.matmul %44, %7, %cst_32 {dimension_numbers = #tpu.dot_dimension_numbers<[1], [0], [0], [1], [0, 0, 1, 1], [], []>} : vector<2x256xbf16>, vector<256x128xbf16>, vector<2x128xf32> -> vector<2x128xf32>
    %46 = vector.broadcast %8 : vector<1x128xf32> to vector<2x128xf32>
    %47 = arith.addf %45, %46 : vector<2x128xf32>
    %48 = vector.extract_strided_slice %47 {offsets = [0, 0], sizes = [2, 1], strides = [1, 1]} : vector<2x128xf32> to vector<2x1xf32>
    %c1_33 = arith.constant 1 : index
    %c0_34 = arith.constant 0 : index
    %c0_35 = arith.constant 0 : index
    %49 = vector.load %arg8[%c1_33, %c0_34, %c0_35] : memref<4x2x1xf32, #tpu.memory_space<vmem>>, vector<1x2x1xf32>
    %50 = vector.shape_cast %49 : vector<1x2x1xf32> to vector<2x1xf32>
    %51 = vector.shape_cast %48 : vector<2x1xf32> to vector<1x2x1xf32>
    tpu.vector_store %arg8[%c1_33, %c0_34, %c0_35], %51 {strides = array<i32>} : memref<4x2x1xf32, #tpu.memory_space<vmem>>, vector<1x2x1xf32>,
    %52 = vector.extract_strided_slice %47 {offsets = [0, 1], sizes = [2, 2], strides = [1, 1]} : vector<2x128xf32> to vector<2x2xf32>
    %cst_36 = arith.constant 5.000000e-01 : f32
    %53 = vector.broadcast %cst_36 : f32 to vector<2x2xf32>
    %54 = arith.mulf %53, %52 : vector<2x2xf32>
    %55 = math.tanh %54 : vector<2x2xf32>
    %cst_37 = arith.constant 1.000000e+00 : f32
    %56 = vector.broadcast %cst_37 : f32 to vector<2x2xf32>
    %57 = arith.addf %56, %55 : vector<2x2xf32>
    %cst_38 = arith.constant 5.000000e-01 : f32
    %58 = vector.broadcast %cst_38 : f32 to vector<2x2xf32>
    %59 = arith.mulf %58, %57 : vector<2x2xf32>
    %c1_39 = arith.constant 1 : index
    %c0_40 = arith.constant 0 : index
    %c0_41 = arith.constant 0 : index
    %60 = vector.load %arg9[%c1_39, %c0_40, %c0_41] : memref<4x2x2xf32, #tpu.memory_space<vmem>>, vector<1x2x2xf32>
    %61 = vector.shape_cast %60 : vector<1x2x2xf32> to vector<2x2xf32>
    %62 = vector.shape_cast %59 : vector<2x2xf32> to vector<1x2x2xf32>
    tpu.vector_store %arg9[%c1_39, %c0_40, %c0_41], %62 {strides = array<i32>} : memref<4x2x2xf32, #tpu.memory_space<vmem>>, vector<1x2x2xf32>,
    %c2 = arith.constant 2 : index
    %c0_42 = arith.constant 0 : index
    %c0_43 = arith.constant 0 : index
    %63 = vector.load %arg2[%c2, %c0_42, %c0_43] : memref<4x2x32xbf16, #tpu.memory_space<vmem>>, vector<1x2x32xbf16>
    %64 = vector.shape_cast %63 : vector<1x2x32xbf16> to vector<2x32xbf16>
    %cst_44 = arith.constant dense<0.000000e+00> : vector<2x256xf32>
    %65 = tpu.matmul %64, %6, %cst_44 {dimension_numbers = #tpu.dot_dimension_numbers<[1], [0], [0], [1], [0, 0, 1, 1], [], []>} : vector<2x32xbf16>, vector<32x256xbf16>, vector<2x256xf32> -> vector<2x256xf32>
    %66 = arith.addf %5, %65 : vector<2x256xf32>
    %cst_45 = arith.constant -1.000000e+00 : f32
    %cst_46 = arith.constant 1.000000e+00 : f32
    %67 = vector.broadcast %cst_45 : f32 to vector<2x256xf32>
    %68 = arith.maximumf %67, %66 : vector<2x256xf32>
    %69 = vector.broadcast %cst_46 : f32 to vector<2x256xf32>
    %70 = arith.minimumf %69, %68 : vector<2x256xf32>
    %71 = arith.truncf %70 : vector<2x256xf32> to vector<2x256xbf16>
    %cst_47 = arith.constant dense<0.000000e+00> : vector<2x128xf32>
    %72 = tpu.matmul %71, %7, %cst_47 {dimension_numbers = #tpu.dot_dimension_numbers<[1], [0], [0], [1], [0, 0, 1, 1], [], []>} : vector<2x256xbf16>, vector<256x128xbf16>, vector<2x128xf32> -> vector<2x128xf32>
    %73 = vector.broadcast %8 : vector<1x128xf32> to vector<2x128xf32>
    %74 = arith.addf %72, %73 : vector<2x128xf32>
    %75 = vector.extract_strided_slice %74 {offsets = [0, 0], sizes = [2, 1], strides = [1, 1]} : vector<2x128xf32> to vector<2x1xf32>
    %c2_48 = arith.constant 2 : index
    %c0_49 = arith.constant 0 : index
    %c0_50 = arith.constant 0 : index
    %76 = vector.load %arg8[%c2_48, %c0_49, %c0_50] : memref<4x2x1xf32, #tpu.memory_space<vmem>>, vector<1x2x1xf32>
    %77 = vector.shape_cast %76 : vector<1x2x1xf32> to vector<2x1xf32>
    %78 = vector.shape_cast %75 : vector<2x1xf32> to vector<1x2x1xf32>
    tpu.vector_store %arg8[%c2_48, %c0_49, %c0_50], %78 {strides = array<i32>} : memref<4x2x1xf32, #tpu.memory_space<vmem>>, vector<1x2x1xf32>,
    %79 = vector.extract_strided_slice %74 {offsets = [0, 1], sizes = [2, 2], strides = [1, 1]} : vector<2x128xf32> to vector<2x2xf32>
    %cst_51 = arith.constant 5.000000e-01 : f32
    %80 = vector.broadcast %cst_51 : f32 to vector<2x2xf32>
    %81 = arith.mulf %80, %79 : vector<2x2xf32>
    %82 = math.tanh %81 : vector<2x2xf32>
    %cst_52 = arith.constant 1.000000e+00 : f32
    %83 = vector.broadcast %cst_52 : f32 to vector<2x2xf32>
    %84 = arith.addf %83, %82 : vector<2x2xf32>
    %cst_53 = arith.constant 5.000000e-01 : f32
    %85 = vector.broadcast %cst_53 : f32 to vector<2x2xf32>
    %86 = arith.mulf %85, %84 : vector<2x2xf32>
    %c2_54 = arith.constant 2 : index
    %c0_55 = arith.constant 0 : index
    %c0_56 = arith.constant 0 : index
    %87 = vector.load %arg9[%c2_54, %c0_55, %c0_56] : memref<4x2x2xf32, #tpu.memory_space<vmem>>, vector<1x2x2xf32>
    %88 = vector.shape_cast %87 : vector<1x2x2xf32> to vector<2x2xf32>
    %89 = vector.shape_cast %86 : vector<2x2xf32> to vector<1x2x2xf32>
    tpu.vector_store %arg9[%c2_54, %c0_55, %c0_56], %89 {strides = array<i32>} : memref<4x2x2xf32, #tpu.memory_space<vmem>>, vector<1x2x2xf32>,
    %c3 = arith.constant 3 : index
    %c0_57 = arith.constant 0 : index
    %c0_58 = arith.constant 0 : index
    %90 = vector.load %arg2[%c3, %c0_57, %c0_58] : memref<4x2x32xbf16, #tpu.memory_space<vmem>>, vector<1x2x32xbf16>
    %91 = vector.shape_cast %90 : vector<1x2x32xbf16> to vector<2x32xbf16>
    %cst_59 = arith.constant dense<0.000000e+00> : vector<2x256xf32>
    %92 = tpu.matmul %91, %6, %cst_59 {dimension_numbers = #tpu.dot_dimension_numbers<[1], [0], [0], [1], [0, 0, 1, 1], [], []>} : vector<2x32xbf16>, vector<32x256xbf16>, vector<2x256xf32> -> vector<2x256xf32>
    %93 = arith.addf %5, %92 : vector<2x256xf32>
    %cst_60 = arith.constant -1.000000e+00 : f32
    %cst_61 = arith.constant 1.000000e+00 : f32
    %94 = vector.broadcast %cst_60 : f32 to vector<2x256xf32>
    %95 = arith.maximumf %94, %93 : vector<2x256xf32>
    %96 = vector.broadcast %cst_61 : f32 to vector<2x256xf32>
    %97 = arith.minimumf %96, %95 : vector<2x256xf32>
    %98 = arith.truncf %97 : vector<2x256xf32> to vector<2x256xbf16>
    %cst_62 = arith.constant dense<0.000000e+00> : vector<2x128xf32>
    %99 = tpu.matmul %98, %7, %cst_62 {dimension_numbers = #tpu.dot_dimension_numbers<[1], [0], [0], [1], [0, 0, 1, 1], [], []>} : vector<2x256xbf16>, vector<256x128xbf16>, vector<2x128xf32> -> vector<2x128xf32>
    %100 = vector.broadcast %8 : vector<1x128xf32> to vector<2x128xf32>
    %101 = arith.addf %99, %100 : vector<2x128xf32>
    %102 = vector.extract_strided_slice %101 {offsets = [0, 0], sizes = [2, 1], strides = [1, 1]} : vector<2x128xf32> to vector<2x1xf32>
    %c3_63 = arith.constant 3 : index
    %c0_64 = arith.constant 0 : index
    %c0_65 = arith.constant 0 : index
    %103 = vector.load %arg8[%c3_63, %c0_64, %c0_65] : memref<4x2x1xf32, #tpu.memory_space<vmem>>, vector<1x2x1xf32>
    %104 = vector.shape_cast %103 : vector<1x2x1xf32> to vector<2x1xf32>
    %105 = vector.shape_cast %102 : vector<2x1xf32> to vector<1x2x1xf32>
    tpu.vector_store %arg8[%c3_63, %c0_64, %c0_65], %105 {strides = array<i32>} : memref<4x2x1xf32, #tpu.memory_space<vmem>>, vector<1x2x1xf32>,
    %106 = vector.extract_strided_slice %101 {offsets = [0, 1], sizes = [2, 2], strides = [1, 1]} : vector<2x128xf32> to vector<2x2xf32>
    %cst_66 = arith.constant 5.000000e-01 : f32
    %107 = vector.broadcast %cst_66 : f32 to vector<2x2xf32>
    %108 = arith.mulf %107, %106 : vector<2x2xf32>
    %109 = math.tanh %108 : vector<2x2xf32>
    %cst_67 = arith.constant 1.000000e+00 : f32
    %110 = vector.broadcast %cst_67 : f32 to vector<2x2xf32>
    %111 = arith.addf %110, %109 : vector<2x2xf32>
    %cst_68 = arith.constant 5.000000e-01 : f32
    %112 = vector.broadcast %cst_68 : f32 to vector<2x2xf32>
    %113 = arith.mulf %112, %111 : vector<2x2xf32>
    %c3_69 = arith.constant 3 : index
    %c0_70 = arith.constant 0 : index
    %c0_71 = arith.constant 0 : index
    %114 = vector.load %arg9[%c3_69, %c0_70, %c0_71] : memref<4x2x2xf32, #tpu.memory_space<vmem>>, vector<1x2x2xf32>
    %115 = vector.shape_cast %114 : vector<1x2x2xf32> to vector<2x2xf32>
    %116 = vector.shape_cast %113 : vector<2x2xf32> to vector<1x2x2xf32>
    tpu.vector_store %arg9[%c3_69, %c0_70, %c0_71], %116 {strides = array<i32>} : memref<4x2x2xf32, #tpu.memory_space<vmem>>, vector<1x2x2xf32>,
    return
  }
  func.func @transform_0(%arg0: i32) -> (i32, i32) {
    %c0_i32 = arith.constant 0 : i32
    %c0_i32_0 = arith.constant 0 : i32
    return %arg0, %c0_i32 : i32, i32
  }
  func.func @transform_1(%arg0: i32) -> (i32, i32, i32) {
    %c0_i32 = arith.constant 0 : i32
    %c0_i32_0 = arith.constant 0 : i32
    %c0_i32_1 = arith.constant 0 : i32
    return %c0_i32, %arg0, %c0_i32_0 : i32, i32, i32
  }
  func.func @transform_2(%arg0: i32) -> (i32, i32) {
    %c0_i32 = arith.constant 0 : i32
    %c0_i32_0 = arith.constant 0 : i32
    %c0_i32_1 = arith.constant 0 : i32
    return %c0_i32, %c0_i32_0 : i32, i32
  }
  func.func @transform_3(%arg0: i32) -> (i32, i32) {
    %c0_i32 = arith.constant 0 : i32
    %c0_i32_0 = arith.constant 0 : i32
    %c0_i32_1 = arith.constant 0 : i32
    return %c0_i32, %c0_i32_0 : i32, i32
  }
  func.func @transform_4(%arg0: i32) -> (i32, i32) {
    %c0_i32 = arith.constant 0 : i32
    %c0_i32_0 = arith.constant 0 : i32
    %c0_i32_1 = arith.constant 0 : i32
    return %c0_i32, %c0_i32_0 : i32, i32
  }
  func.func @transform_5(%arg0: i32) -> (i32, i32) {
    %c0_i32 = arith.constant 0 : i32
    %c0_i32_0 = arith.constant 0 : i32
    %c0_i32_1 = arith.constant 0 : i32
    return %c0_i32, %c0_i32_0 : i32, i32
  }
  func.func @transform_6(%arg0: i32) -> (i32, i32) {
    %c0_i32 = arith.constant 0 : i32
    %c0_i32_0 = arith.constant 0 : i32
    %c0_i32_1 = arith.constant 0 : i32
    return %c0_i32, %c0_i32_0 : i32, i32
  }
  func.func @transform_7(%arg0: i32) -> (i32, i32, i32) {
    %c0_i32 = arith.constant 0 : i32
    %c0_i32_0 = arith.constant 0 : i32
    %c0_i32_1 = arith.constant 0 : i32
    return %c0_i32, %arg0, %c0_i32_0 : i32, i32, i32
  }
  func.func @transform_8(%arg0: i32) -> (i32, i32, i32) {
    %c0_i32 = arith.constant 0 : i32
    %c0_i32_0 = arith.constant 0 : i32
    %c0_i32_1 = arith.constant 0 : i32
    return %c0_i32, %arg0, %c0_i32_0 : i32, i32, i32
  }
}

</mosaic_0001>

<llo_original>
// kernel: sswe_forward.1
$region0: #{sswe_forward.1}
  #allocation0 [shape = 'u32[]', space=smem, size = 0x4, offset = 0x4, fixed_abs, tag = 'smem constant byte address 0x4 - core index']
  #allocation1 [shape = 'u32[144,128]{1,0:T(1,128)}', space=vmem, size = 0x12000, scoped, tag = 'internal scratch']
  %s0 = inlined_call_operand.vmem [shape: bf16[2,128], index: 0, kind: input, shape index: {}]
  %s1 = inlined_call_operand.vmem [shape: bf16[4,2,32], index: 1, kind: input, shape index: {}]
  %s2 = inlined_call_operand.vmem [shape: bf16[128,256], index: 2, kind: input, shape index: {}]
  %s3 = inlined_call_operand.vmem [shape: bf16[32,256], index: 3, kind: input, shape index: {}]
  %s4 = inlined_call_operand.vmem [shape: f32[1,256], index: 4, kind: input, shape index: {}]
  %s5 = inlined_call_operand.vmem [shape: bf16[256,128], index: 5, kind: input, shape index: {}]
  %s6 = inlined_call_operand.hbm [shape: f32[1,128], index: 6, kind: input, shape index: {}]
  %s7 = inlined_call_operand.vmem [shape: f32[4,2,1], index: 7, kind: output, shape index: {0}]
  %s8 = inlined_call_operand.vmem [shape: f32[4,2,2], index: 8, kind: output, shape index: {1}]
  %9 = xla_tuple %s7, %s8
  %s10 = sld [smem:[#allocation0]]
  $region50: #{sswe_forward.1} parent=0
    _
  %s12 = ssub.s32 1, %s10
  %s13 = scalar_select 0, %s12, %s10
  $region1: #{sswe_forward.1} parent=0
    #allocation2 [shape = 'u8[512]{0}', space=vmem, size = 0x400, scoped, tag = 'input window, operand 6, single buffered']
    #allocation3 [shape = 's32[1]{0}', space=sflag, size = 0x4, scoped, tag = 'scoped memory for sswe_forward.1']
    %14 = vsyncpa [#allocation3], 0
    // Predicated region
    $region2: #{sswe_forward.1} parent=1 // pred_check
      _
    $region3: #{sswe_forward.1} parent=1 // pred_check_branch
      %16 = sbr.rel (0) target = $region5
    $region4: #{sswe_forward.1} parent=1 // pred_region
      _
    $region5: #{sswe_forward.1} parent=1 // pred_fallthru
      _
    // Predicated region
    $region6: #{sswe_forward.1} parent=1 // pred_check
      _
    $region7: #{sswe_forward.1} parent=1 // pred_check_branch
      %18 = sbr.rel (0) target = $region9
    $region8: #{sswe_forward.1} parent=1 // pred_region
      _
    $region9: #{sswe_forward.1} parent=1 // pred_fallthru
      _
    // Predicated region
    $region10: #{sswe_forward.1} parent=1 // pred_check
      _
    $region11: #{sswe_forward.1} parent=1 // pred_check_branch
      %20 = sbr.rel (0) target = $region13
    $region12: #{sswe_forward.1} parent=1 // pred_region
      _
    $region13: #{sswe_forward.1} parent=1 // pred_fallthru
      _
    // Predicated region
    $region14: #{sswe_forward.1} parent=1 // pred_check
      _
    $region15: #{sswe_forward.1} parent=1 // pred_check_branch
      %22 = sbr.rel (0) target = $region17
    $region16: #{sswe_forward.1} parent=1 // pred_region
      _
    $region17: #{sswe_forward.1} parent=1 // pred_fallthru
      _
    // Predicated region
    $region18: #{sswe_forward.1} parent=1 // pred_check
      _
    $region19: #{sswe_forward.1} parent=1 // pred_check_branch
      %24 = sbr.rel (0) target = $region21
    $region20: #{sswe_forward.1} parent=1 // pred_region
      _
    $region21: #{sswe_forward.1} parent=1 // pred_fallthru
      _
    // Predicated region
    $region22: #{sswe_forward.1} parent=1 // pred_check
      _
    $region23: #{sswe_forward.1} parent=1 // pred_check_branch
      %26 = sbr.rel (0) target = $region25
    $region24: #{sswe_forward.1} parent=1 // pred_region
      _
    $region25: #{sswe_forward.1} parent=1 // pred_fallthru
      _
    // Predicated region
    $region26: #{sswe_forward.1} parent=1 // pred_check
      _
    $region27: #{sswe_forward.1} parent=1 // pred_check_branch
      %28 = sbr.rel (0) target = $region29
    $region28: #{sswe_forward.1} parent=1 // pred_region
      %s30 = ssub.s32 16, 16
      %31 = vsyncadd [#allocation3], %s30
      %s33 = sshll.u32 [#allocation2], 4
      %s34 = int_to_ptr.vmem [resolvable:$true] %s33
      %36 = dma.hbm_to_vmem [thread:$0]  %s6, 16, %s34, [#allocation3]
    $region29: #{sswe_forward.1} parent=1 // pred_fallthru
      _
    // Predicated region
    $region30: #{sswe_forward.1} parent=1 // pred_check
      _
    $region31: #{sswe_forward.1} parent=1 // pred_check_branch
      %38 = sbr.rel (0) target = $region33
    $region32: #{sswe_forward.1} parent=1 // pred_region
      %39 = dma.done [#allocation3], 16
    $region33: #{sswe_forward.1} parent=1 // pred_fallthru
      _
    %v41 = vld [vmem:[%s0] sm:$0x1]
    %v42 = vld [vmem:[%s2] sm:$0xff]
    %v43 = vld [vmem:[%s2 + $0x8] sm:$0xff]
    %v44 = vld [vmem:[%s2 + $0x10] sm:$0xff]
    %v45 = vld [vmem:[%s2 + $0x18] sm:$0xff]
    %v46 = vld [vmem:[%s2 + $0x20] sm:$0xff]
    %v47 = vld [vmem:[%s2 + $0x28] sm:$0xff]
    %v48 = vld [vmem:[%s2 + $0x30] sm:$0xff]
    %v49 = vld [vmem:[%s2 + $0x38] sm:$0xff]
    %v50 = vld [vmem:[%s2 + $0x40] sm:$0xff]
    %v51 = vld [vmem:[%s2 + $0x48] sm:$0xff]
    %v52 = vld [vmem:[%s2 + $0x50] sm:$0xff]
    %v53 = vld [vmem:[%s2 + $0x58] sm:$0xff]
    %v54 = vld [vmem:[%s2 + $0x60] sm:$0xff]
    %v55 = vld [vmem:[%s2 + $0x68] sm:$0xff]
    %v56 = vld [vmem:[%s2 + $0x70] sm:$0xff]
    %v57 = vld [vmem:[%s2 + $0x78] sm:$0xff]
    %v58 = vld [vmem:[%s4] sm:$0x3]
    %v60 = vlaneseq
    %v61 = vshrl.u32 %v60, 7
    %v62 = vsub.s32 0, %v61
    %v63 = vrot.slane %v58, %v62
    %v64 = vlaneseq
    %v65 = vshrl.u32 %v64, 7
    %v66 = vsub.s32 1, %v65
    %v67 = vrot.slane %v58, %v66
    %v86 = vunpack.c.l.b16 %v42
    %v87 = vunpack.c.h.b16 %v42
    %v88 = vunpack.c.l.b16 %v43
    %v89 = vunpack.c.h.b16 %v43
    %v90 = vunpack.c.l.b16 %v44
    %v91 = vunpack.c.h.b16 %v44
    %v92 = vunpack.c.l.b16 %v45
    %v93 = vunpack.c.h.b16 %v45
    %v94 = vunpack.c.l.b16 %v46
    %v95 = vunpack.c.h.b16 %v46
    %v96 = vunpack.c.l.b16 %v47
    %v97 = vunpack.c.h.b16 %v47
    %v98 = vunpack.c.l.b16 %v48
    %v99 = vunpack.c.h.b16 %v48
    %v100 = vunpack.c.l.b16 %v49
    %v101 = vunpack.c.h.b16 %v49
    %v102 = vunpack.c.l.b16 %v50
    %v103 = vunpack.c.h.b16 %v50
    %v104 = vunpack.c.l.b16 %v51
    %v105 = vunpack.c.h.b16 %v51
    %v106 = vunpack.c.l.b16 %v52
    %v107 = vunpack.c.h.b16 %v52
    %v108 = vunpack.c.l.b16 %v53
    %v109 = vunpack.c.h.b16 %v53
    %v110 = vunpack.c.l.b16 %v54
    %v111 = vunpack.c.h.b16 %v54
    %v112 = vunpack.c.l.b16 %v55
    %v113 = vunpack.c.h.b16 %v55
    %v114 = vunpack.c.l.b16 %v56
    %v115 = vunpack.c.h.b16 %v56
    %v116 = vunpack.c.l.b16 %v57
    %v117 = vunpack.c.h.b16 %v57
    %v118 = vpack.c.b16 %v88, %v86
    %v119 = vpack.c.b16 %v89, %v87
    %v120 = vpack.c.b16 %v92, %v90
    %v121 = vpack.c.b16 %v93, %v91
    %v122 = vpack.c.b16 %v96, %v94
    %v123 = vpack.c.b16 %v97, %v95
    %v124 = vpack.c.b16 %v100, %v98
    %v125 = vpack.c.b16 %v101, %v99
    %v126 = vpack.c.b16 %v104, %v102
    %v127 = vpack.c.b16 %v105, %v103
    %v128 = vpack.c.b16 %v108, %v106
    %v129 = vpack.c.b16 %v109, %v107
    %v130 = vpack.c.b16 %v112, %v110
    %v131 = vpack.c.b16 %v113, %v111
    %v132 = vpack.c.b16 %v116, %v114
    %v133 = vpack.c.b16 %v117, %v115
    %150 = vmatprep.subr.bf16.mxu0 %v119
    %151 = vmatpush1.bf16.msra.mxu0 %v118
    %152 = vmatprep.subr.bf16.mxu0 %v121
    %153 = vmatpush1.bf16.msra.mxu0 %v120
    %154 = vmatprep.subr.bf16.mxu0 %v123
    %155 = vmatpush1.bf16.msra.mxu0 %v122
    %156 = vmatprep.subr.bf16.mxu0 %v125
    %157 = vmatpush1.bf16.msra.mxu0 %v124
    %158 = vmatprep.subr.bf16.mxu0 %v127
    %159 = vmatpush1.bf16.msra.mxu0 %v126
    %160 = vmatprep.subr.bf16.mxu0 %v129
    %161 = vmatpush1.bf16.msra.mxu0 %v128
    %162 = vmatprep.subr.bf16.mxu0 %v131
    %163 = vmatpush1.bf16.msra.mxu0 %v130
    %164 = vmatprep.subr.bf16.mxu0 %v133
    %165 = vmatpush1.bf16.msra.mxu0 %v132
    %166 = vmatprep.subr.bf16.mxu0 0
    %167 = vmatpush1.bf16.msra.mxu0 0
    %168 = vmatprep.subr.bf16.mxu0 0
    %169 = vmatpush1.bf16.msra.mxu0 0
    %170 = vmatprep.subr.bf16.mxu0 0
    %171 = vmatpush1.bf16.msra.mxu0 0
    %172 = vmatprep.subr.bf16.mxu0 0
    %173 = vmatpush1.bf16.msra.mxu0 0
    %174 = vmatprep.subr.bf16.mxu0 0
    %175 = vmatpush1.bf16.msra.mxu0 0
    %176 = vmatprep.subr.bf16.mxu0 0
    %177 = vmatpush1.bf16.msra.mxu0 0
    %178 = vmatprep.subr.bf16.mxu0 0
    %179 = vmatpush1.bf16.msra.mxu0 0
    %180 = vmatprep.subr.bf16.mxu0 0
    %181 = vmatpush1.bf16.msra.mxu0 0
    %182 = vmatprep.mubr.bf16.mxu0 0
    %183 = vmatmul.mubr.bf16.gmra.mrb[0].mxu0 %v41
    %v184 = vpop.f32.mrb[0].mxu0
    %v185 = vadd.f32 %v63, %v184
    %v186 = vpop.f32.mrb[0].mxu0
    %v187 = vadd.f32 %v67, %v186
    %v188 = vpop.f32.mrb[0].mxu0
    %v189 = vpop.f32.mrb[0].mxu0
    %190 = vdwg.mxu0
    %v191 = vld [vmem:[%s3] sm:$0xff]
    %v192 = vld [vmem:[%s3 + $0x8] sm:$0xff]
    %v193 = vld [vmem:[%s3 + $0x10] sm:$0xff]
    %v194 = vld [vmem:[%s3 + $0x18] sm:$0xff]
    %v195 = vld [vmem:[%s5] sm:$0xf]
    %v196 = vld [vmem:[%s5 + $0x4] sm:$0xf]
    %v197 = vld [vmem:[%s5 + $0x8] sm:$0xf]
    %v198 = vld [vmem:[%s5 + $0xc] sm:$0xf]
    %v199 = vld [vmem:[%s5 + $0x10] sm:$0xf]
    %v200 = vld [vmem:[%s5 + $0x14] sm:$0xf]
    %v201 = vld [vmem:[%s5 + $0x18] sm:$0xf]
    %v202 = vld [vmem:[%s5 + $0x1c] sm:$0xf]
    %v203 = vld [vmem:[%s5 + $0x20] sm:$0xf]
    %v204 = vld [vmem:[%s5 + $0x24] sm:$0xf]
    %v205 = vld [vmem:[%s5 + $0x28] sm:$0xf]
    %v206 = vld [vmem:[%s5 + $0x2c] sm:$0xf]
    %v207 = vld [vmem:[%s5 + $0x30] sm:$0xf]
    %v208 = vld [vmem:[%s5 + $0x34] sm:$0xf]
    %v209 = vld [vmem:[%s5 + $0x38] sm:$0xf]
    %v210 = vld [vmem:[%s5 + $0x3c] sm:$0xf]
    %v211 = vld [vmem:[%s5 + $0x40] sm:$0xf]
    %v212 = vld [vmem:[%s5 + $0x44] sm:$0xf]
    %v213 = vld [vmem:[%s5 + $0x48] sm:$0xf]
    %v214 = vld [vmem:[%s5 + $0x4c] sm:$0xf]
    %v215 = vld [vmem:[%s5 + $0x50] sm:$0xf]
    %v216 = vld [vmem:[%s5 + $0x54] sm:$0xf]
    %v217 = vld [vmem:[%s5 + $0x58] sm:$0xf]
    %v218 = vld [vmem:[%s5 + $0x5c] sm:$0xf]
    %v219 = vld [vmem:[%s5 + $0x60] sm:$0xf]
    %v220 = vld [vmem:[%s5 + $0x64] sm:$0xf]
    %v221 = vld [vmem:[%s5 + $0x68] sm:$0xf]
    %v222 = vld [vmem:[%s5 + $0x6c] sm:$0xf]
    %v223 = vld [vmem:[%s5 + $0x70] sm:$0xf]
    %v224 = vld [vmem:[%s5 + $0x74] sm:$0xf]
    %v225 = vld [vmem:[%s5 + $0x78] sm:$0xf]
    %v226 = vld [vmem:[%s5 + $0x7c] sm:$0xf]
    %v227 = vld [vmem:[#allocation2] sm:$0x1]
    %v228 = vld [vmem:[%s1] sm:$0x1]
    %v233 = vunpack.c.l.b16 %v191
    %v234 = vunpack.c.h.b16 %v191
    %v235 = vunpack.c.l.b16 %v192
    %v236 = vunpack.c.h.b16 %v192
    %v237 = vunpack.c.l.b16 %v193
    %v238 = vunpack.c.h.b16 %v193
    %v239 = vunpack.c.l.b16 %v194
    %v240 = vunpack.c.h.b16 %v194
    %v241 = vpack.c.b16 %v235, %v233
    %v242 = vpack.c.b16 %v236, %v234
    %v243 = vpack.c.b16 %v239, %v237
    %v244 = vpack.c.b16 %v240, %v238
    %vm249 = vcmask 261120
    %v251 = vsel %vm249, %v228, 0
    %253 = vmatprep.subr.bf16.mxu0 %v242
    %254 = vmatpush1.bf16.msra.mxu0 %v241
    %255 = vmatprep.subr.bf16.mxu0 %v244
    %256 = vmatpush1.bf16.msra.mxu0 %v243
    %257 = vmatprep.subr.bf16.mxu0 0
    %258 = vmatpush1.bf16.msra.mxu0 0
    %259 = vmatprep.subr.bf16.mxu0 0
    %260 = vmatpush1.bf16.msra.mxu0 0
    %261 = vmatprep.subr.bf16.mxu0 0
    %262 = vmatpush1.bf16.msra.mxu0 0
    %263 = vmatprep.subr.bf16.mxu0 0
    %264 = vmatpush1.bf16.msra.mxu0 0
    %265 = vmatprep.subr.bf16.mxu0 0
    %266 = vmatpush1.bf16.msra.mxu0 0
    %267 = vmatprep.subr.bf16.mxu0 0
    %268 = vmatpush1.bf16.msra.mxu0 0
    %269 = vmatprep.subr.bf16.mxu0 0
    %270 = vmatpush1.bf16.msra.mxu0 0
    %271 = vmatprep.subr.bf16.mxu0 0
    %272 = vmatpush1.bf16.msra.mxu0 0
    %273 = vmatprep.subr.bf16.mxu0 0
    %274 = vmatpush1.bf16.msra.mxu0 0
    %275 = vmatprep.subr.bf16.mxu0 0
    %276 = vmatpush1.bf16.msra.mxu0 0
    %277 = vmatprep.subr.bf16.mxu0 0
    %278 = vmatpush1.bf16.msra.mxu0 0
    %279 = vmatprep.subr.bf16.mxu0 0
    %280 = vmatpush1.bf16.msra.mxu0 0
    %281 = vmatprep.subr.bf16.mxu0 0
    %282 = vmatpush1.bf16.msra.mxu0 0
    %283 = vmatprep.subr.bf16.mxu0 0
    %284 = vmatpush1.bf16.msra.mxu0 0
    %285 = vmatprep.mubr.bf16.mxu0 0
    %286 = vmatmul.mubr.bf16.gmra.mrb[0].mxu0 %v251
    %v287 = vpop.f32.mrb[0].mxu0
    %v288 = vadd.f32 0.0, %v287
    %v289 = vpop.f32.mrb[0].mxu0
    %v290 = vadd.f32 0.0, %v289
    %v291 = vpop.f32.mrb[0].mxu0
    %v292 = vpop.f32.mrb[0].mxu0
    %293 = vdwg.mxu0
    %v294 = vadd.f32 %v185, %v288
    %v295 = vadd.f32 %v187, %v290
    %v296 = vmax.f32 %v294, -1.0
    %v297 = vmax.f32 %v295, -1.0
    %v298 = vmin.f32 %v296, 1.0
    %v299 = vmin.f32 %v297, 1.0
    %v300 = vpack.c.bf16 %v298, %v298
    %v301 = vpack.c.bf16 %v299, %v299
    %v303 = vlaneseq
    %v304 = vshrl.u32 %v303, 7
    %v305 = vsub.s32 0, %v304
    %v306 = vrot.slane %v227, %v305
    %v340 = vunpack.c.l.b16 %v195
    %v341 = vunpack.c.l.b16 %v196
    %v342 = vunpack.c.l.b16 %v197
    %v343 = vunpack.c.l.b16 %v198
    %v344 = vunpack.c.l.b16 %v199
    %v345 = vunpack.c.l.b16 %v200
    %v346 = vunpack.c.l.b16 %v201
    %v347 = vunpack.c.l.b16 %v202
    %v348 = vunpack.c.l.b16 %v203
    %v349 = vunpack.c.l.b16 %v204
    %v350 = vunpack.c.l.b16 %v205
    %v351 = vunpack.c.l.b16 %v206
    %v352 = vunpack.c.l.b16 %v207
    %v353 = vunpack.c.l.b16 %v208
    %v354 = vunpack.c.l.b16 %v209
    %v355 = vunpack.c.l.b16 %v210
    %v356 = vunpack.c.l.b16 %v211
    %v357 = vunpack.c.l.b16 %v212
    %v358 = vunpack.c.l.b16 %v213
    %v359 = vunpack.c.l.b16 %v214
    %v360 = vunpack.c.l.b16 %v215
    %v361 = vunpack.c.l.b16 %v216
    %v362 = vunpack.c.l.b16 %v217
    %v363 = vunpack.c.l.b16 %v218
    %v364 = vunpack.c.l.b16 %v219
    %v365 = vunpack.c.l.b16 %v220
    %v366 = vunpack.c.l.b16 %v221
    %v367 = vunpack.c.l.b16 %v222
    %v368 = vunpack.c.l.b16 %v223
    %v369 = vunpack.c.l.b16 %v224
    %v370 = vunpack.c.l.b16 %v225
    %v371 = vunpack.c.l.b16 %v226
    %v372 = vpack.c.b16 %v341, %v340
    %v373 = vpack.c.b16 %v343, %v342
    %v374 = vpack.c.b16 %v345, %v344
    %v375 = vpack.c.b16 %v347, %v346
    %v376 = vpack.c.b16 %v349, %v348
    %v377 = vpack.c.b16 %v351, %v350
    %v378 = vpack.c.b16 %v353, %v352
    %v379 = vpack.c.b16 %v355, %v354
    %v380 = vpack.c.b16 %v357, %v356
    %v381 = vpack.c.b16 %v359, %v358
    %v382 = vpack.c.b16 %v361, %v360
    %v383 = vpack.c.b16 %v363, %v362
    %v384 = vpack.c.b16 %v365, %v364
    %v385 = vpack.c.b16 %v367, %v366
    %v386 = vpack.c.b16 %v369, %v368
    %v387 = vpack.c.b16 %v371, %v370
    %404 = vmatprep.subr.bf16.mxu0 0
    %405 = vmatpush1.bf16.msra.mxu0 %v372
    %406 = vmatprep.subr.bf16.mxu0 0
    %407 = vmatpush1.bf16.msra.mxu0 %v373
    %408 = vmatprep.subr.bf16.mxu0 0
    %409 = vmatpush1.bf16.msra.mxu0 %v374
    %410 = vmatprep.subr.bf16.mxu0 0
    %411 = vmatpush1.bf16.msra.mxu0 %v375
    %412 = vmatprep.subr.bf16.mxu0 0
    %413 = vmatpush1.bf16.msra.mxu0 %v376
    %414 = vmatprep.subr.bf16.mxu0 0
    %415 = vmatpush1.bf16.msra.mxu0 %v377
    %416 = vmatprep.subr.bf16.mxu0 0
    %417 = vmatpush1.bf16.msra.mxu0 %v378
    %418 = vmatprep.subr.bf16.mxu0 0
    %419 = vmatpush1.bf16.msra.mxu0 %v379
    %420 = vmatprep.subr.bf16.mxu0 0
    %421 = vmatpush1.bf16.msra.mxu0 %v380
    %422 = vmatprep.subr.bf16.mxu0 0
    %423 = vmatpush1.bf16.msra.mxu0 %v381
    %424 = vmatprep.subr.bf16.mxu0 0
    %425 = vmatpush1.bf16.msra.mxu0 %v382
    %426 = vmatprep.subr.bf16.mxu0 0
    %427 = vmatpush1.bf16.msra.mxu0 %v383
    %428 = vmatprep.subr.bf16.mxu0 0
    %429 = vmatpush1.bf16.msra.mxu0 %v384
    %430 = vmatprep.subr.bf16.mxu0 0
    %431 = vmatpush1.bf16.msra.mxu0 %v385
    %432 = vmatprep.subr.bf16.mxu0 0
    %433 = vmatpush1.bf16.msra.mxu0 %v386
    %434 = vmatprep.subr.bf16.mxu0 0
    %435 = vmatpush1.bf16.msra.mxu0 %v387
    %436 = vmatprep.mubr.bf16.mxu0 %v301
    %437 = vmatmul.mubr.bf16.gmra.mrb[0].mxu0 %v300
    %v438 = vpop.f32.mrb[0].mxu0
    %v439 = vadd.f32 %v306, %v438
    %v440 = vpop.f32.mrb[0].mxu0
    %v441 = vpop.f32.mrb[0].mxu0
    %v442 = vpop.f32.mrb[0].mxu0
    %443 = vdwg.mxu0
    %vm444 = vcmask 1024
    %445 = vst.msk [vmem:[%s7] sm:$0x3] %vm444, %v439
    %v446 = vmul.f32 %v439, 0.5
    %v447 = vtanh.pop %v446
    %v448 = vadd.f32 %v447, 1.0
    %v449 = vmul.f32 %v448, 0.5
    %451 = vrot.lane.b32.xlu0 %v449, 127
    %v452 = vpop.permute.xlu0 %451
    %vm454 = vcmask 9216
    %455 = vst.msk [vmem:[%s8] sm:$0x3] %vm454, %v452
    %s456 = scalar_lea.vmem %s1, 1
    %v457 = vld [vmem:[%s456] sm:$0x1]
    %v459 = vsel %vm249, %v457, 0
    %461 = vmatprep.subr.bf16.mxu0 %v242
    %462 = vmatpush1.bf16.msra.mxu0 %v241
    %463 = vmatprep.subr.bf16.mxu0 %v244
    %464 = vmatpush1.bf16.msra.mxu0 %v243
    %465 = vmatprep.subr.bf16.mxu0 0
    %466 = vmatpush1.bf16.msra.mxu0 0
    %467 = vmatprep.subr.bf16.mxu0 0
    %468 = vmatpush1.bf16.msra.mxu0 0
    %469 = vmatprep.subr.bf16.mxu0 0
    %470 = vmatpush1.bf16.msra.mxu0 0
    %471 = vmatprep.subr.bf16.mxu0 0
    %472 = vmatpush1.bf16.msra.mxu0 0
    %473 = vmatprep.subr.bf16.mxu0 0
    %474 = vmatpush1.bf16.msra.mxu0 0
    %475 = vmatprep.subr.bf16.mxu0 0
    %476 = vmatpush1.bf16.msra.mxu0 0
    %477 = vmatprep.subr.bf16.mxu0 0
    %478 = vmatpush1.bf16.msra.mxu0 0
    %479 = vmatprep.subr.bf16.mxu0 0
    %480 = vmatpush1.bf16.msra.mxu0 0
    %481 = vmatprep.subr.bf16.mxu0 0
    %482 = vmatpush1.bf16.msra.mxu0 0
    %483 = vmatprep.subr.bf16.mxu0 0
    %484 = vmatpush1.bf16.msra.mxu0 0
    %485 = vmatprep.subr.bf16.mxu0 0
    %486 = vmatpush1.bf16.msra.mxu0 0
    %487 = vmatprep.subr.bf16.mxu0 0
    %488 = vmatpush1.bf16.msra.mxu0 0
    %489 = vmatprep.subr.bf16.mxu0 0
    %490 = vmatpush1.bf16.msra.mxu0 0
    %491 = vmatprep.subr.bf16.mxu0 0
    %492 = vmatpush1.bf16.msra.mxu0 0
    %493 = vmatprep.mubr.bf16.mxu0 0
    %494 = vmatmul.mubr.bf16.gmra.mrb[0].mxu0 %v459
    %v495 = vpop.f32.mrb[0].mxu0
    %v496 = vadd.f32 0.0, %v495
    %v497 = vpop.f32.mrb[0].mxu0
    %v498 = vadd.f32 0.0, %v497
    %v499 = vpop.f32.mrb[0].mxu0
    %v500 = vpop.f32.mrb[0].mxu0
    %501 = vdwg.mxu0
    %v502 = vadd.f32 %v185, %v496
    %v503 = vadd.f32 %v187, %v498
    %v504 = vmax.f32 %v502, -1.0
    %v505 = vmax.f32 %v503, -1.0
    %v506 = vmin.f32 %v504, 1.0
    %v507 = vmin.f32 %v505, 1.0
    %v508 = vpack.c.bf16 %v506, %v506
    %v509 = vpack.c.bf16 %v507, %v507
    %510 = vmatprep.subr.bf16.mxu0 0
    %511 = vmatpush1.bf16.msra.mxu0 %v372
    %512 = vmatprep.subr.bf16.mxu0 0
    %513 = vmatpush1.bf16.msra.mxu0 %v373
    %514 = vmatprep.subr.bf16.mxu0 0
    %515 = vmatpush1.bf16.msra.mxu0 %v374
    %516 = vmatprep.subr.bf16.mxu0 0
    %517 = vmatpush1.bf16.msra.mxu0 %v375
    %518 = vmatprep.subr.bf16.mxu0 0
    %519 = vmatpush1.bf16.msra.mxu0 %v376
    %520 = vmatprep.subr.bf16.mxu0 0
    %521 = vmatpush1.bf16.msra.mxu0 %v377
    %522 = vmatprep.subr.bf16.mxu0 0
    %523 = vmatpush1.bf16.msra.mxu0 %v378
    %524 = vmatprep.subr.bf16.mxu0 0
    %525 = vmatpush1.bf16.msra.mxu0 %v379
    %526 = vmatprep.subr.bf16.mxu0 0
    %527 = vmatpush1.bf16.msra.mxu0 %v380
    %528 = vmatprep.subr.bf16.mxu0 0
    %529 = vmatpush1.bf16.msra.mxu0 %v381
    %530 = vmatprep.subr.bf16.mxu0 0
    %531 = vmatpush1.bf16.msra.mxu0 %v382
    %532 = vmatprep.subr.bf16.mxu0 0
    %533 = vmatpush1.bf16.msra.mxu0 %v383
    %534 = vmatprep.subr.bf16.mxu0 0
    %535 = vmatpush1.bf16.msra.mxu0 %v384
    %536 = vmatprep.subr.bf16.mxu0 0
    %537 = vmatpush1.bf16.msra.mxu0 %v385
    %538 = vmatprep.subr.bf16.mxu0 0
    %539 = vmatpush1.bf16.msra.mxu0 %v386
    %540 = vmatprep.subr.bf16.mxu0 0
    %541 = vmatpush1.bf16.msra.mxu0 %v387
    %542 = vmatprep.mubr.bf16.mxu0 %v509
    %543 = vmatmul.mubr.bf16.gmra.mrb[0].mxu0 %v508
    %v544 = vpop.f32.mrb[0].mxu0
    %v545 = vadd.f32 %v306, %v544
    %v546 = vpop.f32.mrb[0].mxu0
    %v547 = vpop.f32.mrb[0].mxu0
    %v548 = vpop.f32.mrb[0].mxu0
    %549 = vdwg.mxu0
    %s550 = scalar_lea.vmem %s7, 2
    %551 = vst.msk [vmem:[%s550] sm:$0x3] %vm444, %v545
    %v552 = vmul.f32 %v545, 0.5
    %v553 = vtanh.pop %v552
    %v554 = vadd.f32 %v553, 1.0
    %v555 = vmul.f32 %v554, 0.5
    %557 = vrot.lane.b32.xlu0 %v555, 127
    %v558 = vpop.permute.xlu0 %557
    %s560 = scalar_lea.vmem %s8, 2
    %561 = vst.msk [vmem:[%s560] sm:$0x3] %vm454, %v558
    %s562 = scalar_lea.vmem %s1, 2
    %v563 = vld [vmem:[%s562] sm:$0x1]
    %v565 = vsel %vm249, %v563, 0
    %567 = vmatprep.subr.bf16.mxu0 %v242
    %568 = vmatpush1.bf16.msra.mxu0 %v241
    %569 = vmatprep.subr.bf16.mxu0 %v244
    %570 = vmatpush1.bf16.msra.mxu0 %v243
    %571 = vmatprep.subr.bf16.mxu0 0
    %572 = vmatpush1.bf16.msra.mxu0 0
    %573 = vmatprep.subr.bf16.mxu0 0
    %574 = vmatpush1.bf16.msra.mxu0 0
    %575 = vmatprep.subr.bf16.mxu0 0
    %576 = vmatpush1.bf16.msra.mxu0 0
    %577 = vmatprep.subr.bf16.mxu0 0
    %578 = vmatpush1.bf16.msra.mxu0 0
    %579 = vmatprep.subr.bf16.mxu0 0
    %580 = vmatpush1.bf16.msra.mxu0 0
    %581 = vmatprep.subr.bf16.mxu0 0
    %582 = vmatpush1.bf16.msra.mxu0 0
    %583 = vmatprep.subr.bf16.mxu0 0
    %584 = vmatpush1.bf16.msra.mxu0 0
    %585 = vmatprep.subr.bf16.mxu0 0
    %586 = vmatpush1.bf16.msra.mxu0 0
    %587 = vmatprep.subr.bf16.mxu0 0
    %588 = vmatpush1.bf16.msra.mxu0 0
    %589 = vmatprep.subr.bf16.mxu0 0
    %590 = vmatpush1.bf16.msra.mxu0 0
    %591 = vmatprep.subr.bf16.mxu0 0
    %592 = vmatpush1.bf16.msra.mxu0 0
    %593 = vmatprep.subr.bf16.mxu0 0
    %594 = vmatpush1.bf16.msra.mxu0 0
    %595 = vmatprep.subr.bf16.mxu0 0
    %596 = vmatpush1.bf16.msra.mxu0 0
    %597 = vmatprep.subr.bf16.mxu0 0
    %598 = vmatpush1.bf16.msra.mxu0 0
    %599 = vmatprep.mubr.bf16.mxu0 0
    %600 = vmatmul.mubr.bf16.gmra.mrb[0].mxu0 %v565
    %v601 = vpop.f32.mrb[0].mxu0
    %v602 = vadd.f32 0.0, %v601
    %v603 = vpop.f32.mrb[0].mxu0
    %v604 = vadd.f32 0.0, %v603
    %v605 = vpop.f32.mrb[0].mxu0
    %v606 = vpop.f32.mrb[0].mxu0
    %607 = vdwg.mxu0
    %v608 = vadd.f32 %v185, %v602
    %v609 = vadd.f32 %v187, %v604
    %v610 = vmax.f32 %v608, -1.0
    %v611 = vmax.f32 %v609, -1.0
    %v612 = vmin.f32 %v610, 1.0
    %v613 = vmin.f32 %v611, 1.0
    %v614 = vpack.c.bf16 %v612, %v612
    %v615 = vpack.c.bf16 %v613, %v613
    %616 = vmatprep.subr.bf16.mxu0 0
    %617 = vmatpush1.bf16.msra.mxu0 %v372
    %618 = vmatprep.subr.bf16.mxu0 0
    %619 = vmatpush1.bf16.msra.mxu0 %v373
    %620 = vmatprep.subr.bf16.mxu0 0
    %621 = vmatpush1.bf16.msra.mxu0 %v374
    %622 = vmatprep.subr.bf16.mxu0 0
    %623 = vmatpush1.bf16.msra.mxu0 %v375
    %624 = vmatprep.subr.bf16.mxu0 0
    %625 = vmatpush1.bf16.msra.mxu0 %v376
    %626 = vmatprep.subr.bf16.mxu0 0
    %627 = vmatpush1.bf16.msra.mxu0 %v377
    %628 = vmatprep.subr.bf16.mxu0 0
    %629 = vmatpush1.bf16.msra.mxu0 %v378
    %630 = vmatprep.subr.bf16.mxu0 0
    %631 = vmatpush1.bf16.msra.mxu0 %v379
    %632 = vmatprep.subr.bf16.mxu0 0
    %633 = vmatpush1.bf16.msra.mxu0 %v380
    %634 = vmatprep.subr.bf16.mxu0 0
    %635 = vmatpush1.bf16.msra.mxu0 %v381
    %636 = vmatprep.subr.bf16.mxu0 0
    %637 = vmatpush1.bf16.msra.mxu0 %v382
    %638 = vmatprep.subr.bf16.mxu0 0
    %639 = vmatpush1.bf16.msra.mxu0 %v383
    %640 = vmatprep.subr.bf16.mxu0 0
    %641 = vmatpush1.bf16.msra.mxu0 %v384
    %642 = vmatprep.subr.bf16.mxu0 0
    %643 = vmatpush1.bf16.msra.mxu0 %v385
    %644 = vmatprep.subr.bf16.mxu0 0
    %645 = vmatpush1.bf16.msra.mxu0 %v386
    %646 = vmatprep.subr.bf16.mxu0 0
    %647 = vmatpush1.bf16.msra.mxu0 %v387
    %648 = vmatprep.mubr.bf16.mxu0 %v615
    %649 = vmatmul.mubr.bf16.gmra.mrb[0].mxu0 %v614
    %v650 = vpop.f32.mrb[0].mxu0
    %v651 = vadd.f32 %v306, %v650
    %v652 = vpop.f32.mrb[0].mxu0
    %v653 = vpop.f32.mrb[0].mxu0
    %v654 = vpop.f32.mrb[0].mxu0
    %655 = vdwg.mxu0
    %s656 = scalar_lea.vmem %s7, 4
    %657 = vst.msk [vmem:[%s656] sm:$0x3] %vm444, %v651
    %v658 = vmul.f32 %v651, 0.5
    %v659 = vtanh.pop %v658
    %v660 = vadd.f32 %v659, 1.0
    %v661 = vmul.f32 %v660, 0.5
    %663 = vrot.lane.b32.xlu0 %v661, 127
    %v664 = vpop.permute.xlu0 %663
    %s666 = scalar_lea.vmem %s8, 4
    %667 = vst.msk [vmem:[%s666] sm:$0x3] %vm454, %v664
    %s668 = scalar_lea.vmem %s1, 3
    %v669 = vld [vmem:[%s668] sm:$0x1]
    %v671 = vsel %vm249, %v669, 0
    %673 = vmatprep.subr.bf16.mxu0 %v242
    %674 = vmatpush1.bf16.msra.mxu0 %v241
    %675 = vmatprep.subr.bf16.mxu0 %v244
    %676 = vmatpush1.bf16.msra.mxu0 %v243
    %677 = vmatprep.subr.bf16.mxu0 0
    %678 = vmatpush1.bf16.msra.mxu0 0
    %679 = vmatprep.subr.bf16.mxu0 0
    %680 = vmatpush1.bf16.msra.mxu0 0
    %681 = vmatprep.subr.bf16.mxu0 0
    %682 = vmatpush1.bf16.msra.mxu0 0
    %683 = vmatprep.subr.bf16.mxu0 0
    %684 = vmatpush1.bf16.msra.mxu0 0
    %685 = vmatprep.subr.bf16.mxu0 0
    %686 = vmatpush1.bf16.msra.mxu0 0
    %687 = vmatprep.subr.bf16.mxu0 0
    %688 = vmatpush1.bf16.msra.mxu0 0
    %689 = vmatprep.subr.bf16.mxu0 0
    %690 = vmatpush1.bf16.msra.mxu0 0
    %691 = vmatprep.subr.bf16.mxu0 0
    %692 = vmatpush1.bf16.msra.mxu0 0
    %693 = vmatprep.subr.bf16.mxu0 0
    %694 = vmatpush1.bf16.msra.mxu0 0
    %695 = vmatprep.subr.bf16.mxu0 0
    %696 = vmatpush1.bf16.msra.mxu0 0
    %697 = vmatprep.subr.bf16.mxu0 0
    %698 = vmatpush1.bf16.msra.mxu0 0
    %699 = vmatprep.subr.bf16.mxu0 0
    %700 = vmatpush1.bf16.msra.mxu0 0
    %701 = vmatprep.subr.bf16.mxu0 0
    %702 = vmatpush1.bf16.msra.mxu0 0
    %703 = vmatprep.subr.bf16.mxu0 0
    %704 = vmatpush1.bf16.msra.mxu0 0
    %705 = vmatprep.mubr.bf16.mxu0 0
    %706 = vmatmul.mubr.bf16.gmra.mrb[0].mxu0 %v671
    %v707 = vpop.f32.mrb[0].mxu0
    %v708 = vadd.f32 0.0, %v707
    %v709 = vpop.f32.mrb[0].mxu0
    %v710 = vadd.f32 0.0, %v709
    %v711 = vpop.f32.mrb[0].mxu0
    %v712 = vpop.f32.mrb[0].mxu0
    %713 = vdwg.mxu0
    %v714 = vadd.f32 %v185, %v708
    %v715 = vadd.f32 %v187, %v710
    %v716 = vmax.f32 %v714, -1.0
    %v717 = vmax.f32 %v715, -1.0
    %v718 = vmin.f32 %v716, 1.0
    %v719 = vmin.f32 %v717, 1.0
    %v720 = vpack.c.bf16 %v718, %v718
    %v721 = vpack.c.bf16 %v719, %v719
    %722 = vmatprep.subr.bf16.mxu0 0
    %723 = vmatpush1.bf16.msra.mxu0 %v372
    %724 = vmatprep.subr.bf16.mxu0 0
    %725 = vmatpush1.bf16.msra.mxu0 %v373
    %726 = vmatprep.subr.bf16.mxu0 0
    %727 = vmatpush1.bf16.msra.mxu0 %v374
    %728 = vmatprep.subr.bf16.mxu0 0
    %729 = vmatpush1.bf16.msra.mxu0 %v375
    %730 = vmatprep.subr.bf16.mxu0 0
    %731 = vmatpush1.bf16.msra.mxu0 %v376
    %732 = vmatprep.subr.bf16.mxu0 0
    %733 = vmatpush1.bf16.msra.mxu0 %v377
    %734 = vmatprep.subr.bf16.mxu0 0
    %735 = vmatpush1.bf16.msra.mxu0 %v378
    %736 = vmatprep.subr.bf16.mxu0 0
    %737 = vmatpush1.bf16.msra.mxu0 %v379
    %738 = vmatprep.subr.bf16.mxu0 0
    %739 = vmatpush1.bf16.msra.mxu0 %v380
    %740 = vmatprep.subr.bf16.mxu0 0
    %741 = vmatpush1.bf16.msra.mxu0 %v381
    %742 = vmatprep.subr.bf16.mxu0 0
    %743 = vmatpush1.bf16.msra.mxu0 %v382
    %744 = vmatprep.subr.bf16.mxu0 0
    %745 = vmatpush1.bf16.msra.mxu0 %v383
    %746 = vmatprep.subr.bf16.mxu0 0
    %747 = vmatpush1.bf16.msra.mxu0 %v384
    %748 = vmatprep.subr.bf16.mxu0 0
    %749 = vmatpush1.bf16.msra.mxu0 %v385
    %750 = vmatprep.subr.bf16.mxu0 0
    %751 = vmatpush1.bf16.msra.mxu0 %v386
    %752 = vmatprep.subr.bf16.mxu0 0
    %753 = vmatpush1.bf16.msra.mxu0 %v387
    %754 = vmatprep.mubr.bf16.mxu0 %v721
    %755 = vmatmul.mubr.bf16.gmra.mrb[0].mxu0 %v720
    %v756 = vpop.f32.mrb[0].mxu0
    %v757 = vadd.f32 %v306, %v756
    %v758 = vpop.f32.mrb[0].mxu0
    %v759 = vpop.f32.mrb[0].mxu0
    %v760 = vpop.f32.mrb[0].mxu0
    %761 = vdwg.mxu0
    %s762 = scalar_lea.vmem %s7, 6
    %763 = vst.msk [vmem:[%s762] sm:$0x3] %vm444, %v757
    %v764 = vmul.f32 %v757, 0.5
    %v765 = vtanh.pop %v764
    %v766 = vadd.f32 %v765, 1.0
    %v767 = vmul.f32 %v766, 0.5
    %769 = vrot.lane.b32.xlu0 %v767, 127
    %v770 = vpop.permute.xlu0 %769
    %s772 = scalar_lea.vmem %s8, 6
    %773 = vst.msk [vmem:[%s772] sm:$0x3] %vm454, %v770
    // Predicated region
    $region34: #{sswe_forward.1} parent=1 // pred_check
      _
    $region35: #{sswe_forward.1} parent=1 // pred_check_branch
      %775 = sbr.rel (0) target = $region37
    $region36: #{sswe_forward.1} parent=1 // pred_region
      _
    $region37: #{sswe_forward.1} parent=1 // pred_fallthru
      _
    // Predicated region
    $region38: #{sswe_forward.1} parent=1 // pred_check
      _
    $region39: #{sswe_forward.1} parent=1 // pred_check_branch
      %777 = sbr.rel (0) target = $region41
    $region40: #{sswe_forward.1} parent=1 // pred_region
      _
    $region41: #{sswe_forward.1} parent=1 // pred_fallthru
      _
    // Predicated region
    $region42: #{sswe_forward.1} parent=1 // pred_check
      _
    $region43: #{sswe_forward.1} parent=1 // pred_check_branch
      %779 = sbr.rel (0) target = $region45
    $region44: #{sswe_forward.1} parent=1 // pred_region
      _
    $region45: #{sswe_forward.1} parent=1 // pred_fallthru
      _
    // Predicated region
    $region46: #{sswe_forward.1} parent=1 // pred_check
      _
    $region47: #{sswe_forward.1} parent=1 // pred_check_branch
      %781 = sbr.rel (0) target = $region49
    $region48: #{sswe_forward.1} parent=1 // pred_region
      _
    $region49: #{sswe_forward.1} parent=1 // pred_fallthru
      _
    %782 = vsyncpa [#allocation3], 1

</llo_original>
